<compile_context>
chip_gen: v7x
topology: tpu7x:2x2x1
jax: 0.10.0
libtpu: 0.0.40
codegen_flags: <defaults>
</compile_context>

<pallas_src>
import jax
import jax.numpy as jnp
import numpy as np
from jax.experimental import pallas as pl
from jax.experimental.pallas import tpu as pltpu


# ----------------------------------------------------------------------------- #
# Kernel
# ----------------------------------------------------------------------------- #
def _mlp_kernel(x_ref,
                w1_ref, b1_ref,
                w2_ref, b2_ref,
                w3_ref, b3_ref,
                w4_ref, b4_ref,
                w5t_ref, b5_ref,
                out_ref):
    """Fused forward pass; all matmuls accumulate in f32 on the MXU."""
    cd = w1_ref.dtype  # compute dtype (bf16 by default, f32 optional)

    # x stays f32 in HBM; the cast to the compute dtype happens here on the VPU,
    # hidden under the MXU chain (avoids a separate XLA cast + extra HBM pass).
    h = jnp.dot(x_ref[...].astype(cd), w1_ref[...],
                preferred_element_type=jnp.float32)
    h = jnp.maximum(h + b1_ref[...], 0.0)                                 # ReLU

    h = jnp.dot(h.astype(cd), w2_ref[...], preferred_element_type=jnp.float32)
    h = jnp.maximum(h + b2_ref[...], 0.0)                                 # ReLU

    h = jnp.dot(h.astype(cd), w3_ref[...], preferred_element_type=jnp.float32)
    h = jnp.maximum(h + b3_ref[...], 0.0)                                 # ReLU

    h = jnp.dot(h.astype(cd), w4_ref[...], preferred_element_type=jnp.float32)
    h = jnp.maximum(h + b4_ref[...], 0.0)                                 # ReLU

    # Lane-dense final layer: (1, d_small) @ (d_small, tile) -> (1, tile).
    # Stored as a dense row (unmasked vst when tile is a multiple of 128)
    # instead of a 1-lane (tile, 1) column.
    ht = h.astype(cd).T                                # XLU transpose (free slot)
    gain = jnp.dot(w5t_ref[...], ht,
                   preferred_element_type=jnp.float32) + b5_ref[...]
    out_ref[...] = gain.reshape(out_ref.shape).astype(out_ref.dtype)


# ----------------------------------------------------------------------------- #
# Tiling / budget helpers
# ----------------------------------------------------------------------------- #
def _pick_batch_tile(B, *, target=512, min_tile=256):
    """Batch tile that divides B.

    - Single tile for ragged B or B <= 2*min_tile: per-grid-step overhead and a
      small M starve the MXU, and a v7x grid split only pays when each core gets
      >= min_tile rows.
    - Large B: biggest multiple-of-128 divisor <= target (unmasked lane-dense
      output stores), falling back to multiples of 8, falling back to B.
    """
    if B % 8 != 0 or B <= 2 * min_tile:
        return B
    top128 = target - (target % 128)
    for t in range(top128, 127, -128):
        if t >= min_tile and B % t == 0:
            return t
    top8 = target - (target % 8)
    for t in range(top8, min_tile - 1, -8):
        if B % t == 0:
            return t
    return B


def _vmem_budget_bytes(batch_tile, L, d_mid, d_small, w_bytes, x_bytes):
    """Scoped-VMEM budget derived from the real footprint (+ headroom)."""
    x_tile = 2 * batch_tile * L * x_bytes                         # double-buffered
    weights = 2 * w_bytes * (2 * L * L + L * d_mid + d_mid * d_small + d_small)
    biases = 2 * 4 * (2 * L + d_mid + d_small + 1)
    out_tile = 2 * batch_tile * 4
    interm = 6 * batch_tile * max(L, d_mid) * 4                   # live f32 temps
    total = x_tile + weights + biases + out_tile + interm
    budget = int(total * 1.5) + (4 << 20)                         # headroom
    return max(min(budget, 64 << 20), 8 << 20)


# ----------------------------------------------------------------------------- #
# Wrapper
# ----------------------------------------------------------------------------- #
def prepare_fco_estim_params(params, compute_dtype=jnp.bfloat16):
    """One-time parameter prep: cast weights to the compute dtype and transpose
    FC_final to a lane-dense (1, d_small) row.  Do this at init, not per call."""
    return {
        "w1": jnp.asarray(params["w1"], compute_dtype),
        "w2": jnp.asarray(params["w2"], compute_dtype),
        "w3": jnp.asarray(params["w3"], compute_dtype),
        "w4": jnp.asarray(params["w4"], compute_dtype),
        "w5t": jnp.asarray(params["w5"], compute_dtype).T,   # (1, d_small)
        "b1": jnp.asarray(params["b1"], jnp.float32),
        "b2": jnp.asarray(params["b2"], jnp.float32),
        "b3": jnp.asarray(params["b3"], jnp.float32),
        "b4": jnp.asarray(params["b4"], jnp.float32),
        "b5": jnp.asarray(params["b5"], jnp.float32),
    }


def fco_estim_forward(x, prep, *, batch_tile=None):
    """FCO_Estim forward with a fused Pallas kernel.

    x:    [B, input_len] float32 (kept f32 in HBM; cast happens in-kernel)
    prep: output of prepare_fco_estim_params (bf16 weights by default)
    Note: B must be divisible by batch_tile (no ragged-batch handling).
    """
    B, L = x.shape
    d_mid = prep["w3"].shape[1]
    d_small = prep["w4"].shape[1]

    if batch_tile is None:
        batch_tile = _pick_batch_tile(B)
    assert B % batch_tile == 0, (B, batch_tile)
    if batch_tile != B:
        assert batch_tile % 8 == 0, "batch_tile must be a multiple of 8 (sublanes)"
    num_tiles = B // batch_tile

    w1, w2, w3, w4, w5t = prep["w1"], prep["w2"], prep["w3"], prep["w4"], prep["w5t"]
    b1, b2, b3, b4, b5 = prep["b1"], prep["b2"], prep["b3"], prep["b4"], prep["b5"]

    def resident(arr):
        # Full block + constant index_map: Pallas keeps it VMEM-resident across
        # grid steps instead of re-DMAing per step.
        return pl.BlockSpec(arr.shape, lambda i: (0,) * arr.ndim)

    in_specs = [
        pl.BlockSpec((batch_tile, L), lambda i: (i, 0)),   # x: streamed over batch
        resident(w1), resident(b1),
        resident(w2), resident(b2),
        resident(w3), resident(b3),
        resident(w4), resident(b4),
        resident(w5t), resident(b5),
    ]
    # Lane-dense output: one (1, 1, batch_tile) row per grid step.  batch_tile is
    # a multiple of 128 for large batches -> unmasked vst, dense writeback DMA.
    out_specs = pl.BlockSpec((1, 1, batch_tile), lambda i: (i, 0, 0))
    out_shape = jax.ShapeDtypeStruct((num_tiles, 1, batch_tile), jnp.float32)

    w_bytes = w1.dtype.itemsize
    x_bytes = x.dtype.itemsize
    n_weight_elems = 2 * L * L + L * d_mid + d_mid * d_small + d_small
    n_bias_elems = 2 * L + d_mid + d_small + 1
    cost = pl.CostEstimate(
        flops=2 * B * (2 * L * L + L * d_mid + d_mid * d_small + d_small),
        transcendentals=0,
        bytes_accessed=(B * L * x_bytes + n_weight_elems * w_bytes
                        + n_bias_elems * 4 + B * 4),
    )

    out = pl.pallas_call(
        _mlp_kernel,
        out_shape=out_shape,
        grid_spec=pltpu.PrefetchScalarGridSpec(
            num_scalar_prefetch=0,
            grid=(num_tiles,),
            in_specs=in_specs,
            out_specs=out_specs,
        ),
        compiler_params=pltpu.CompilerParams(
            dimension_semantics=("parallel",),
            vmem_limit_bytes=_vmem_budget_bytes(
                batch_tile, L, d_mid, d_small, w_bytes, x_bytes),
        ),
        cost_estimate=cost,
    )(x, w1, b1, w2, b2, w3, b3, w4, b4, w5t, b5)

    # (num_tiles, 1, batch_tile) rows are the per-tile gains in batch order.
    return out.reshape(B, 1)


# ----------------------------------------------------------------------------- #
# Init / reference (correctness checks)
# ----------------------------------------------------------------------------- #
def _xavier_uniform(key, fan_in, fan_out, dtype=jnp.float32):
    """torch.nn.init.xavier_uniform_ bounds (gain=1), in (in, out) layout."""
    bound = float(np.sqrt(6.0 / (fan_in + fan_out)))
    return jax.random.uniform(key, (fan_in, fan_out), dtype=dtype,
                              minval=-bound, maxval=bound)


def init_fco_estim_params(key, input_len, d_mid, d_small):
    """Synthetic parameters mirroring FCO_Estim.__init__:
       FC(L->L), FC2(L->L), FCdil_500(L->d_mid), FCdil_50(d_mid->d_small),
       FC_final(d_small->1).  Xavier-uniform weights, zero biases."""
    ks = jax.random.split(key, 5)
    return {
        "w1": _xavier_uniform(ks[0], input_len, input_len),
        "b1": jnp.zeros((1, input_len), jnp.float32),
        "w2": _xavier_uniform(ks[1], input_len, input_len),
        "b2": jnp.zeros((1, input_len), jnp.float32),
        "w3": _xavier_uniform(ks[2], input_len, d_mid),
        "b3": jnp.zeros((1, d_mid), jnp.float32),
        "w4": _xavier_uniform(ks[3], d_mid, d_small),
        "b4": jnp.zeros((1, d_small), jnp.float32),
        "w5": _xavier_uniform(ks[4], d_small, 1),
        "b5": jnp.zeros((1, 1), jnp.float32),
    }


def fco_estim_reference(x, params):
    """Pure-JAX f32 reference of the PyTorch forward pass."""
    h = jnp.maximum(x @ params["w1"] + params["b1"], 0.0)
    h = jnp.maximum(h @ params["w2"] + params["b2"], 0.0)
    h = jnp.maximum(h @ params["w3"] + params["b3"], 0.0)
    h = jnp.maximum(h @ params["w4"] + params["b4"], 0.0)
    return h @ params["w5"] + params["b5"]


if __name__ == "__main__":
    # Small shapes consistent with the module's structure:
    #   input_len -> 128, FCdil_500 -> 64, FCdil_50 -> 32, FC_final -> 1
    INPUT_LEN = 128
    D_MID = 64
    D_SMALL = 32
    BATCH = 16

    key = jax.random.PRNGKey(0)
    k_x, k_p, k_xl = jax.random.split(key, 3)

    x = jax.random.normal(k_x, (BATCH, INPUT_LEN), dtype=jnp.float32)
    params = init_fco_estim_params(k_p, INPUT_LEN, D_MID, D_SMALL)
    ref = jax.block_until_ready(fco_estim_reference(x, params))

    prep_f32 = prepare_fco_estim_params(params, compute_dtype=jnp.float32)
    prep_bf16 = prepare_fco_estim_params(params)            # bf16 default

    # 1) f32 path, explicit 8-row tile -> grid of 2: exercises the pipelined x DMA
    #    and multi-tile writeback with exact-precision comparison.
    gain_f32 = jax.block_until_ready(fco_estim_forward(x, prep_f32, batch_tile=8))
    assert gain_f32.shape == (BATCH, 1), gain_f32.shape
    np.testing.assert_allclose(np.asarray(gain_f32), np.asarray(ref),
                               rtol=1e-5, atol=1e-5)

    # 2) f32 path, large batch with the default tile picker (tile=512, grid of 2,
    #    128-multiple lane-dense output) -- tight tolerance.
    x_large = jax.random.normal(k_xl, (1024, INPUT_LEN), dtype=jnp.float32)
    ref_large = jax.block_until_ready(fco_estim_reference(x_large, params))
    gain_large = jax.block_until_ready(fco_estim_forward(x_large, prep_f32))
    np.testing.assert_allclose(np.asarray(gain_large), np.asarray(ref_large),
                               rtol=1e-5, atol=1e-5)

    # 3) Default bf16 compute path (f32 accumulation, x cast in-kernel) --
    #    tolerance bounds the bf16 quantization of x and the weights.
    gain_bf16 = jax.block_until_ready(fco_estim_forward(x, prep_bf16))
    np.testing.assert_allclose(np.asarray(gain_bf16), np.asarray(ref),
                               rtol=1e-1, atol=1e-1)

    print("KERNEL_OK")
</pallas_src>

<mosaic_0001>
module attributes {stable_mosaic.version = 11 : i64} {
  func.func @_mlp_kernel(%arg0: i32, %arg1: memref<8x128xf32, #tpu.memory_space<vmem>>, %arg2: memref<128x128xf32, #tpu.memory_space<vmem>>, %arg3: memref<1x128xf32, #tpu.memory_space<vmem>>, %arg4: memref<128x128xf32, #tpu.memory_space<vmem>>, %arg5: memref<1x128xf32, #tpu.memory_space<vmem>>, %arg6: memref<128x64xf32, #tpu.memory_space<vmem>>, %arg7: memref<1x64xf32, #tpu.memory_space<vmem>>, %arg8: memref<64x32xf32, #tpu.memory_space<vmem>>, %arg9: memref<1x32xf32, #tpu.memory_space<vmem>>, %arg10: memref<1x32xf32, #tpu.memory_space<vmem>>, %arg11: memref<1x1xf32, #tpu.memory_space<vmem>>, %arg12: memref<1x1x8xf32, #tpu.memory_space<vmem>>) attributes {dimension_semantics = [#tpu.dimension_semantics<parallel>], iteration_bounds = array<i64: 2>, scalar_prefetch = 0 : i64, scratch_operands = 0 : i64, tpu.core_type = #tpu.core_type<tc>, window_params = [{transform_indices = @transform_0, window_bounds = array<i64: 8, 128>}, {pipeline_mode = #tpu.pipeline_mode<synchronous>, transform_indices = @transform_1, window_bounds = array<i64: 128, 128>}, {pipeline_mode = #tpu.pipeline_mode<synchronous>, transform_indices = @transform_2, window_bounds = array<i64: 1, 128>}, {pipeline_mode = #tpu.pipeline_mode<synchronous>, transform_indices = @transform_3, window_bounds = array<i64: 128, 128>}, {pipeline_mode = #tpu.pipeline_mode<synchronous>, transform_indices = @transform_4, window_bounds = array<i64: 1, 128>}, {pipeline_mode = #tpu.pipeline_mode<synchronous>, transform_indices = @transform_5, window_bounds = array<i64: 128, 64>}, {pipeline_mode = #tpu.pipeline_mode<synchronous>, transform_indices = @transform_6, window_bounds = array<i64: 1, 64>}, {pipeline_mode = #tpu.pipeline_mode<synchronous>, transform_indices = @transform_7, window_bounds = array<i64: 64, 32>}, {pipeline_mode = #tpu.pipeline_mode<synchronous>, transform_indices = @transform_8, window_bounds = array<i64: 1, 32>}, {pipeline_mode = #tpu.pipeline_mode<synchronous>, transform_indices = @transform_9, window_bounds = array<i64: 1, 32>}, {pipeline_mode = #tpu.pipeline_mode<synchronous>, transform_indices = @transform_10, window_bounds = array<i64: 1, 1>}, {transform_indices = @transform_11, window_bounds = array<i64: 1, 1, 8>}]} {
    %c0 = arith.constant 0 : index
    %c0_0 = arith.constant 0 : index
    %0 = vector.load %arg1[%c0, %c0_0] : memref<8x128xf32, #tpu.memory_space<vmem>>, vector<8x128xf32>
    %c0_1 = arith.constant 0 : index
    %c0_2 = arith.constant 0 : index
    %1 = vector.load %arg2[%c0_1, %c0_2] : memref<128x128xf32, #tpu.memory_space<vmem>>, vector<128x128xf32>
    %cst = arith.constant dense<0.000000e+00> : vector<8x128xf32>
    %2 = tpu.matmul %0, %1, %cst {dimension_numbers = #tpu.dot_dimension_numbers<[1], [0], [0], [1], [0, 0, 1, 1], [], []>} : vector<8x128xf32>, vector<128x128xf32>, vector<8x128xf32> -> vector<8x128xf32>
    %c0_3 = arith.constant 0 : index
    %c0_4 = arith.constant 0 : index
    %3 = vector.load %arg3[%c0_3, %c0_4] : memref<1x128xf32, #tpu.memory_space<vmem>>, vector<1x128xf32>
    %4 = vector.broadcast %3 : vector<1x128xf32> to vector<8x128xf32>
    %5 = arith.addf %2, %4 : vector<8x128xf32>
    %cst_5 = arith.constant 0.000000e+00 : f32
    %6 = vector.broadcast %cst_5 : f32 to vector<8x128xf32>
    %7 = arith.maximumf %5, %6 : vector<8x128xf32>
    %c0_6 = arith.constant 0 : index
    %c0_7 = arith.constant 0 : index
    %8 = vector.load %arg4[%c0_6, %c0_7] : memref<128x128xf32, #tpu.memory_space<vmem>>, vector<128x128xf32>
    %cst_8 = arith.constant dense<0.000000e+00> : vector<8x128xf32>
    %9 = tpu.matmul %7, %8, %cst_8 {dimension_numbers = #tpu.dot_dimension_numbers<[1], [0], [0], [1], [0, 0, 1, 1], [], []>} : vector<8x128xf32>, vector<128x128xf32>, vector<8x128xf32> -> vector<8x128xf32>
    %c0_9 = arith.constant 0 : index
    %c0_10 = arith.constant 0 : index
    %10 = vector.load %arg5[%c0_9, %c0_10] : memref<1x128xf32, #tpu.memory_space<vmem>>, vector<1x128xf32>
    %11 = vector.broadcast %10 : vector<1x128xf32> to vector<8x128xf32>
    %12 = arith.addf %9, %11 : vector<8x128xf32>
    %cst_11 = arith.constant 0.000000e+00 : f32
    %13 = vector.broadcast %cst_11 : f32 to vector<8x128xf32>
    %14 = arith.maximumf %12, %13 : vector<8x128xf32>
    %c0_12 = arith.constant 0 : index
    %c0_13 = arith.constant 0 : index
    %15 = vector.load %arg6[%c0_12, %c0_13] : memref<128x64xf32, #tpu.memory_space<vmem>>, vector<128x64xf32>
    %cst_14 = arith.constant dense<0.000000e+00> : vector<8x64xf32>
    %16 = tpu.matmul %14, %15, %cst_14 {dimension_numbers = #tpu.dot_dimension_numbers<[1], [0], [0], [1], [0, 0, 1, 1], [], []>} : vector<8x128xf32>, vector<128x64xf32>, vector<8x64xf32> -> vector<8x64xf32>
    %c0_15 = arith.constant 0 : index
    %c0_16 = arith.constant 0 : index
    %17 = vector.load %arg7[%c0_15, %c0_16] : memref<1x64xf32, #tpu.memory_space<vmem>>, vector<1x64xf32>
    %18 = vector.broadcast %17 : vector<1x64xf32> to vector<8x64xf32>
    %19 = arith.addf %16, %18 : vector<8x64xf32>
    %cst_17 = arith.constant 0.000000e+00 : f32
    %20 = vector.broadcast %cst_17 : f32 to vector<8x64xf32>
    %21 = arith.maximumf %19, %20 : vector<8x64xf32>
    %c0_18 = arith.constant 0 : index
    %c0_19 = arith.constant 0 : index
    %22 = vector.load %arg8[%c0_18, %c0_19] : memref<64x32xf32, #tpu.memory_space<vmem>>, vector<64x32xf32>
    %cst_20 = arith.constant dense<0.000000e+00> : vector<8x32xf32>
    %23 = tpu.matmul %21, %22, %cst_20 {dimension_numbers = #tpu.dot_dimension_numbers<[1], [0], [0], [1], [0, 0, 1, 1], [], []>} : vector<8x64xf32>, vector<64x32xf32>, vector<8x32xf32> -> vector<8x32xf32>
    %c0_21 = arith.constant 0 : index
    %c0_22 = arith.constant 0 : index
    %24 = vector.load %arg9[%c0_21, %c0_22] : memref<1x32xf32, #tpu.memory_space<vmem>>, vector<1x32xf32>
    %25 = vector.broadcast %24 : vector<1x32xf32> to vector<8x32xf32>
    %26 = arith.addf %23, %25 : vector<8x32xf32>
    %cst_23 = arith.constant 0.000000e+00 : f32
    %27 = vector.broadcast %cst_23 : f32 to vector<8x32xf32>
    %28 = arith.maximumf %26, %27 : vector<8x32xf32>
    %29 = tpu.transpose %28, [1, 0] : vector<8x32xf32> -> vector<32x8xf32>
    %c0_24 = arith.constant 0 : index
    %c0_25 = arith.constant 0 : index
    %30 = vector.load %arg10[%c0_24, %c0_25] : memref<1x32xf32, #tpu.memory_space<vmem>>, vector<1x32xf32>
    %cst_26 = arith.constant dense<0.000000e+00> : vector<1x8xf32>
    %31 = tpu.matmul %30, %29, %cst_26 {dimension_numbers = #tpu.dot_dimension_numbers<[1], [0], [0], [1], [0, 0, 1, 1], [], []>} : vector<1x32xf32>, vector<32x8xf32>, vector<1x8xf32> -> vector<1x8xf32>
    %c0_27 = arith.constant 0 : index
    %c0_28 = arith.constant 0 : index
    %32 = vector.load %arg11[%c0_27, %c0_28] : memref<1x1xf32, #tpu.memory_space<vmem>>, vector<1x1xf32>
    %33 = vector.broadcast %32 : vector<1x1xf32> to vector<1x8xf32>
    %34 = arith.addf %31, %33 : vector<1x8xf32>
    %35 = vector.shape_cast %34 : vector<1x8xf32> to vector<1x1x8xf32>
    %c0_29 = arith.constant 0 : index
    %c0_30 = arith.constant 0 : index
    %c0_31 = arith.constant 0 : index
    %36 = vector.load %arg12[%c0_29, %c0_30, %c0_31] : memref<1x1x8xf32, #tpu.memory_space<vmem>>, vector<1x1x8xf32>
    tpu.vector_store %arg12[%c0_29, %c0_30, %c0_31], %35 {strides = array<i32>} : memref<1x1x8xf32, #tpu.memory_space<vmem>>, vector<1x1x8xf32>,
    return
  }
  func.func @transform_0(%arg0: i32) -> (i32, i32) {
    %c0_i32 = arith.constant 0 : i32
    %c0_i32_0 = arith.constant 0 : i32
    return %arg0, %c0_i32 : i32, i32
  }
  func.func @transform_1(%arg0: i32) -> (i32, i32) {
    %c0_i32 = arith.constant 0 : i32
    %c0_i32_0 = arith.constant 0 : i32
    %c0_i32_1 = arith.constant 0 : i32
    return %c0_i32, %c0_i32_0 : i32, i32
  }
  func.func @transform_2(%arg0: i32) -> (i32, i32) {
    %c0_i32 = arith.constant 0 : i32
    %c0_i32_0 = arith.constant 0 : i32
    %c0_i32_1 = arith.constant 0 : i32
    return %c0_i32, %c0_i32_0 : i32, i32
  }
  func.func @transform_3(%arg0: i32) -> (i32, i32) {
    %c0_i32 = arith.constant 0 : i32
    %c0_i32_0 = arith.constant 0 : i32
    %c0_i32_1 = arith.constant 0 : i32
    return %c0_i32, %c0_i32_0 : i32, i32
  }
  func.func @transform_4(%arg0: i32) -> (i32, i32) {
    %c0_i32 = arith.constant 0 : i32
    %c0_i32_0 = arith.constant 0 : i32
    %c0_i32_1 = arith.constant 0 : i32
    return %c0_i32, %c0_i32_0 : i32, i32
  }
  func.func @transform_5(%arg0: i32) -> (i32, i32) {
    %c0_i32 = arith.constant 0 : i32
    %c0_i32_0 = arith.constant 0 : i32
    %c0_i32_1 = arith.constant 0 : i32
    return %c0_i32, %c0_i32_0 : i32, i32
  }
  func.func @transform_6(%arg0: i32) -> (i32, i32) {
    %c0_i32 = arith.constant 0 : i32
    %c0_i32_0 = arith.constant 0 : i32
    %c0_i32_1 = arith.constant 0 : i32
    return %c0_i32, %c0_i32_0 : i32, i32
  }
  func.func @transform_7(%arg0: i32) -> (i32, i32) {
    %c0_i32 = arith.constant 0 : i32
    %c0_i32_0 = arith.constant 0 : i32
    %c0_i32_1 = arith.constant 0 : i32
    return %c0_i32, %c0_i32_0 : i32, i32
  }
  func.func @transform_8(%arg0: i32) -> (i32, i32) {
    %c0_i32 = arith.constant 0 : i32
    %c0_i32_0 = arith.constant 0 : i32
    %c0_i32_1 = arith.constant 0 : i32
    return %c0_i32, %c0_i32_0 : i32, i32
  }
  func.func @transform_9(%arg0: i32) -> (i32, i32) {
    %c0_i32 = arith.constant 0 : i32
    %c0_i32_0 = arith.constant 0 : i32
    %c0_i32_1 = arith.constant 0 : i32
    return %c0_i32, %c0_i32_0 : i32, i32
  }
  func.func @transform_10(%arg0: i32) -> (i32, i32) {
    %c0_i32 = arith.constant 0 : i32
    %c0_i32_0 = arith.constant 0 : i32
    %c0_i32_1 = arith.constant 0 : i32
    return %c0_i32, %c0_i32_0 : i32, i32
  }
  func.func @transform_11(%arg0: i32) -> (i32, i32, i32) {
    %c0_i32 = arith.constant 0 : i32
    %c0_i32_0 = arith.constant 0 : i32
    %c0_i32_1 = arith.constant 0 : i32
    return %arg0, %c0_i32, %c0_i32_0 : i32, i32, i32
  }
}

</mosaic_0001>

<llo_original>
// kernel: tpu_custom_call.1
$region0: #{tpu_custom_call.1}
  #allocation0 [shape = 'u32[]', space=smem, size = 0x4, offset = 0x4, fixed_abs, tag = 'smem constant byte address 0x4 - core index']
  #allocation1 [shape = 'u32[144,128]{1,0:T(1,128)}', space=vmem, size = 0x12000, scoped, tag = 'internal scratch']
  #allocation2 [shape = 'f32[1,1]{1,0:T(1,128)S(1)}', space=vmem, size = 0x200, scoped, tag = 'scoped memory for tpu_custom_call.1']
  %s0 = inlined_call_operand.vmem [shape: f32[16,128], index: 0, kind: input, shape index: {}]
  %s1 = inlined_call_operand.vmem [shape: f32[128,128], index: 1, kind: input, shape index: {}]
  %s2 = inlined_call_operand.vmem [shape: f32[1,128], index: 2, kind: input, shape index: {}]
  %s3 = inlined_call_operand.vmem [shape: f32[128,128], index: 3, kind: input, shape index: {}]
  %s4 = inlined_call_operand.vmem [shape: f32[1,128], index: 4, kind: input, shape index: {}]
  %s5 = inlined_call_operand.vmem [shape: f32[128,64], index: 5, kind: input, shape index: {}]
  %s6 = inlined_call_operand.vmem [shape: f32[1,64], index: 6, kind: input, shape index: {}]
  %s7 = inlined_call_operand.vmem [shape: f32[64,32], index: 7, kind: input, shape index: {}]
  %s8 = inlined_call_operand.vmem [shape: f32[1,32], index: 8, kind: input, shape index: {}]
  %s9 = inlined_call_operand.vmem [shape: f32[1,32], index: 9, kind: input, shape index: {}]
  %s10 = inlined_call_operand.<no memory space> [shape: f32[1,1], index: 10, kind: input, shape index: {}]
  %s11 = inlined_call_operand.hbm [shape: f32[2,1,8], index: 11, kind: output, shape index: {}]
  %s12 = sld [smem:[#allocation0]]
  $region77: #{tpu_custom_call.1} parent=0
    _
  %s14 = ssub.s32 1, %s12
  %s15 = scalar_select 0, %s14, %s12
  %v16 = vstv %s10
  %17 = vst [vmem:[#allocation2] sm:$0x1] %v16
  $region1: #{tpu_custom_call.1} parent=0
    #allocation3 [shape = 'u8[1024]{0}', space=vmem, size = 0x400, scoped, tag = 'output window, operand 0']
    #allocation4 [shape = 's32[2]{0}', space=sflag, size = 0x8, scoped, tag = 'scoped memory for tpu_custom_call.1']
    %18 = vsyncpa [#allocation4], 0
    %s19 = scalar_lea.sflag [#allocation4], 1
    %20 = vsyncpa %s19, 0
    loop: start=0, step=1, limit=4
    $region2: #{tpu_custom_call.1} parent=1 // loop_pre_header
      _
    $region3: #{tpu_custom_call.1} parent=1 // loop_header
      %s22 = sphi 0, %s26
      %p23 = scmp.ge.s32.totalorder %s22, 4
      %s32 = sphi 0, %s34
      %s35 = sphi 0, %s32
      %s36 = sphi 0, %s35
      %s52 = sphi 0, %s36
      %s56 = sphi 0, %s56
      %s58 = sphi 0, %s56
      %s59 = sphi 0, %s58
      %s73 = sphi 0, %s59
      %s77 = sphi 0, %s77
      %s79 = sphi 0, %s77
      %s80 = sphi 0, %s79
      %s94 = sphi 0, %s80
      %s98 = sphi 0, %s98
      %s100 = sphi 0, %s98
      %s101 = sphi 0, %s100
      %s115 = sphi 0, %s101
      %s119 = sphi 0, %s119
      %s121 = sphi 0, %s119
      %s122 = sphi 0, %s121
      %s136 = sphi 0, %s122
      %s140 = sphi 0, %s140
      %s142 = sphi 0, %s140
      %s143 = sphi 0, %s142
      %s157 = sphi 0, %s143
      %s161 = sphi 0, %s161
      %s163 = sphi 0, %s161
      %s164 = sphi 0, %s163
      %s178 = sphi 0, %s164
      %s182 = sphi 0, %s182
      %s184 = sphi 0, %s182
      %s185 = sphi 0, %s184
      %s199 = sphi 0, %s185
      %s203 = sphi 0, %s203
      %s205 = sphi 0, %s203
      %s206 = sphi 0, %s205
      %s220 = sphi 0, %s206
      %s224 = sphi 0, %s224
      %s226 = sphi 0, %s224
      %s227 = sphi 0, %s226
      %s241 = sphi 0, %s227
      %s245 = sphi 0, %s245
      %s247 = sphi 0, %s245
      %s248 = sphi 0, %s247
      %s262 = sphi 0, %s248
      %s268 = sphi 0, %s270
      %s271 = sphi 0, %s268
      %s272 = sphi 0, %s271
      %s288 = sphi 0, %s272
    $region4: #{tpu_custom_call.1} parent=1 // loop_header_branch
      %25 = sbr.rel (%p23) target = $region8
    $region5: #{tpu_custom_call.1} parent=1 // loop_body
      %s27 = ssub.s32 %s22, 1
      %s28 = ssub.s32 %s22, 2
      %s29 = sadd.s32 %s22, 1
      %s30 = ssub.s32 %s22, %s29
      %p31 = scmp.eq.s32.totalorder %s30, 0
      %s33 = sadd.s32 %s32, 1
      %s34 = scalar_select %p31, %s32, %s33
      %p37 = pneg %p31
      %p38 = scmp.eq.s32.totalorder %s22, 1
      %p39 = por %p37, %p38
      %p40 = scmp.ne.s32.totalorder %s32, %s35
      %p41 = scmp.eq.s32.totalorder %s22, 0
      %p42 = por %p40, %p41
      %p43 = scmp.ne.s32.totalorder %s32, %s35
      %p44 = scmp.eq.s32.totalorder %s27, 1
      %p45 = por %p43, %p44
      %p46 = scmp.ne.s32.totalorder %s35, %s36
      %p47 = scmp.eq.s32.totalorder %s27, 0
      %p48 = por %p46, %p47
      %p49 = scmp.ne.s32.totalorder %s35, %s36
      %p50 = scmp.eq.s32.totalorder %s28, 1
      %p51 = por %p49, %p50
      %p53 = scmp.ne.s32.totalorder %s36, %s52
      %p54 = scmp.eq.s32.totalorder %s28, 0
      %p55 = por %p53, %p54
      %s57 = sadd.s32 %s56, 1
      %p60 = scmp.eq.s32.totalorder %s22, 1
      %p61 = scmp.ne.s32.totalorder %s56, %s58
      %p62 = scmp.eq.s32.totalorder %s22, 0
      %p63 = por %p61, %p62
      %p64 = scmp.ne.s32.totalorder %s56, %s58
      %p65 = scmp.eq.s32.totalorder %s27, 1
      %p66 = por %p64, %p65
      %p67 = scmp.ne.s32.totalorder %s58, %s59
      %p68 = scmp.eq.s32.totalorder %s27, 0
      %p69 = por %p67, %p68
      %p70 = scmp.ne.s32.totalorder %s58, %s59
      %p71 = scmp.eq.s32.totalorder %s28, 1
      %p72 = por %p70, %p71
      %p74 = scmp.ne.s32.totalorder %s59, %s73
      %p75 = scmp.eq.s32.totalorder %s28, 0
      %p76 = por %p74, %p75
      %s78 = sadd.s32 %s77, 1
      %p81 = scmp.eq.s32.totalorder %s22, 1
      %p82 = scmp.ne.s32.totalorder %s77, %s79
      %p83 = scmp.eq.s32.totalorder %s22, 0
      %p84 = por %p82, %p83
      %p85 = scmp.ne.s32.totalorder %s77, %s79
      %p86 = scmp.eq.s32.totalorder %s27, 1
      %p87 = por %p85, %p86
      %p88 = scmp.ne.s32.totalorder %s79, %s80
      %p89 = scmp.eq.s32.totalorder %s27, 0
      %p90 = por %p88, %p89
      %p91 = scmp.ne.s32.totalorder %s79, %s80
      %p92 = scmp.eq.s32.totalorder %s28, 1
      %p93 = por %p91, %p92
      %p95 = scmp.ne.s32.totalorder %s80, %s94
      %p96 = scmp.eq.s32.totalorder %s28, 0
      %p97 = por %p95, %p96
      %s99 = sadd.s32 %s98, 1
      %p102 = scmp.eq.s32.totalorder %s22, 1
      %p103 = scmp.ne.s32.totalorder %s98, %s100
      %p104 = scmp.eq.s32.totalorder %s22, 0
      %p105 = por %p103, %p104
      %p106 = scmp.ne.s32.totalorder %s98, %s100
      %p107 = scmp.eq.s32.totalorder %s27, 1
      %p108 = por %p106, %p107
      %p109 = scmp.ne.s32.totalorder %s100, %s101
      %p110 = scmp.eq.s32.totalorder %s27, 0
      %p111 = por %p109, %p110
      %p112 = scmp.ne.s32.totalorder %s100, %s101
      %p113 = scmp.eq.s32.totalorder %s28, 1
      %p114 = por %p112, %p113
      %p116 = scmp.ne.s32.totalorder %s101, %s115
      %p117 = scmp.eq.s32.totalorder %s28, 0
      %p118 = por %p116, %p117
      %s120 = sadd.s32 %s119, 1
      %p123 = scmp.eq.s32.totalorder %s22, 1
      %p124 = scmp.ne.s32.totalorder %s119, %s121
      %p125 = scmp.eq.s32.totalorder %s22, 0
      %p126 = por %p124, %p125
      %p127 = scmp.ne.s32.totalorder %s119, %s121
      %p128 = scmp.eq.s32.totalorder %s27, 1
      %p129 = por %p127, %p128
      %p130 = scmp.ne.s32.totalorder %s121, %s122
      %p131 = scmp.eq.s32.totalorder %s27, 0
      %p132 = por %p130, %p131
      %p133 = scmp.ne.s32.totalorder %s121, %s122
      %p134 = scmp.eq.s32.totalorder %s28, 1
      %p135 = por %p133, %p134
      %p137 = scmp.ne.s32.totalorder %s122, %s136
      %p138 = scmp.eq.s32.totalorder %s28, 0
      %p139 = por %p137, %p138
      %s141 = sadd.s32 %s140, 1
      %p144 = scmp.eq.s32.totalorder %s22, 1
      %p145 = scmp.ne.s32.totalorder %s140, %s142
      %p146 = scmp.eq.s32.totalorder %s22, 0
      %p147 = por %p145, %p146
      %p148 = scmp.ne.s32.totalorder %s140, %s142
      %p149 = scmp.eq.s32.totalorder %s27, 1
      %p150 = por %p148, %p149
      %p151 = scmp.ne.s32.totalorder %s142, %s143
      %p152 = scmp.eq.s32.totalorder %s27, 0
      %p153 = por %p151, %p152
      %p154 = scmp.ne.s32.totalorder %s142, %s143
      %p155 = scmp.eq.s32.totalorder %s28, 1
      %p156 = por %p154, %p155
      %p158 = scmp.ne.s32.totalorder %s143, %s157
      %p159 = scmp.eq.s32.totalorder %s28, 0
      %p160 = por %p158, %p159
      %s162 = sadd.s32 %s161, 1
      %p165 = scmp.eq.s32.totalorder %s22, 1
      %p166 = scmp.ne.s32.totalorder %s161, %s163
      %p167 = scmp.eq.s32.totalorder %s22, 0
      %p168 = por %p166, %p167
      %p169 = scmp.ne.s32.totalorder %s161, %s163
      %p170 = scmp.eq.s32.totalorder %s27, 1
      %p171 = por %p169, %p170
      %p172 = scmp.ne.s32.totalorder %s163, %s164
      %p173 = scmp.eq.s32.totalorder %s27, 0
      %p174 = por %p172, %p173
      %p175 = scmp.ne.s32.totalorder %s163, %s164
      %p176 = scmp.eq.s32.totalorder %s28, 1
      %p177 = por %p175, %p176
      %p179 = scmp.ne.s32.totalorder %s164, %s178
      %p180 = scmp.eq.s32.totalorder %s28, 0
      %p181 = por %p179, %p180
      %s183 = sadd.s32 %s182, 1
      %p186 = scmp.eq.s32.totalorder %s22, 1
      %p187 = scmp.ne.s32.totalorder %s182, %s184
      %p188 = scmp.eq.s32.totalorder %s22, 0
      %p189 = por %p187, %p188
      %p190 = scmp.ne.s32.totalorder %s182, %s184
      %p191 = scmp.eq.s32.totalorder %s27, 1
      %p192 = por %p190, %p191
      %p193 = scmp.ne.s32.totalorder %s184, %s185
      %p194 = scmp.eq.s32.totalorder %s27, 0
      %p195 = por %p193, %p194
      %p196 = scmp.ne.s32.totalorder %s184, %s185
      %p197 = scmp.eq.s32.totalorder %s28, 1
      %p198 = por %p196, %p197
      %p200 = scmp.ne.s32.totalorder %s185, %s199
      %p201 = scmp.eq.s32.totalorder %s28, 0
      %p202 = por %p200, %p201
      %s204 = sadd.s32 %s203, 1
      %p207 = scmp.eq.s32.totalorder %s22, 1
      %p208 = scmp.ne.s32.totalorder %s203, %s205
      %p209 = scmp.eq.s32.totalorder %s22, 0
      %p210 = por %p208, %p209
      %p211 = scmp.ne.s32.totalorder %s203, %s205
      %p212 = scmp.eq.s32.totalorder %s27, 1
      %p213 = por %p211, %p212
      %p214 = scmp.ne.s32.totalorder %s205, %s206
      %p215 = scmp.eq.s32.totalorder %s27, 0
      %p216 = por %p214, %p215
      %p217 = scmp.ne.s32.totalorder %s205, %s206
      %p218 = scmp.eq.s32.totalorder %s28, 1
      %p219 = por %p217, %p218
      %p221 = scmp.ne.s32.totalorder %s206, %s220
      %p222 = scmp.eq.s32.totalorder %s28, 0
      %p223 = por %p221, %p222
      %s225 = sadd.s32 %s224, 1
      %p228 = scmp.eq.s32.totalorder %s22, 1
      %p229 = scmp.ne.s32.totalorder %s224, %s226
      %p230 = scmp.eq.s32.totalorder %s22, 0
      %p231 = por %p229, %p230
      %p232 = scmp.ne.s32.totalorder %s224, %s226
      %p233 = scmp.eq.s32.totalorder %s27, 1
      %p234 = por %p232, %p233
      %p235 = scmp.ne.s32.totalorder %s226, %s227
      %p236 = scmp.eq.s32.totalorder %s27, 0
      %p237 = por %p235, %p236
      %p238 = scmp.ne.s32.totalorder %s226, %s227
      %p239 = scmp.eq.s32.totalorder %s28, 1
      %p240 = por %p238, %p239
      %p242 = scmp.ne.s32.totalorder %s227, %s241
      %p243 = scmp.eq.s32.totalorder %s28, 0
      %p244 = por %p242, %p243
      %s246 = sadd.s32 %s245, 1
      %p249 = scmp.eq.s32.totalorder %s22, 1
      %p250 = scmp.ne.s32.totalorder %s245, %s247
      %p251 = scmp.eq.s32.totalorder %s22, 0
      %p252 = por %p250, %p251
      %p253 = scmp.ne.s32.totalorder %s245, %s247
      %p254 = scmp.eq.s32.totalorder %s27, 1
      %p255 = por %p253, %p254
      %p256 = scmp.ne.s32.totalorder %s247, %s248
      %p257 = scmp.eq.s32.totalorder %s27, 0
      %p258 = por %p256, %p257
      %p259 = scmp.ne.s32.totalorder %s247, %s248
      %p260 = scmp.eq.s32.totalorder %s28, 1
      %p261 = por %p259, %p260
      %p263 = scmp.ne.s32.totalorder %s248, %s262
      %p264 = scmp.eq.s32.totalorder %s28, 0
      %p265 = por %p263, %p264
      %s266 = ssub.s32 %s22, %s29
      %p267 = scmp.eq.s32.totalorder %s266, 0
      %s269 = sadd.s32 %s268, 1
      %s270 = scalar_select %p267, %s268, %s269
      %p273 = pneg %p267
      %p274 = scmp.eq.s32.totalorder %s22, 1
      %p275 = por %p273, %p274
      %p276 = scmp.ne.s32.totalorder %s268, %s271
      %p277 = scmp.eq.s32.totalorder %s22, 0
      %p278 = por %p276, %p277
      %p279 = scmp.ne.s32.totalorder %s268, %s271
      %p280 = scmp.eq.s32.totalorder %s27, 1
      %p281 = por %p279, %p280
      %p282 = scmp.ne.s32.totalorder %s271, %s272
      %p283 = scmp.eq.s32.totalorder %s27, 0
      %p284 = por %p282, %p283
      %p285 = scmp.ne.s32.totalorder %s271, %s272
      %p286 = scmp.eq.s32.totalorder %s28, 1
      %p287 = por %p285, %p286
      %p289 = scmp.ne.s32.totalorder %s272, %s288
      %p290 = scmp.eq.s32.totalorder %s28, 0
      %p291 = por %p289, %p290
      %p292 = scmp.le.s32.totalorder 1, %s22
      %p293 = scmp.lt.s32.totalorder %s22, 3
      %p294 = pnand %p292, %p293
      %p295 = pneg %p294
      // Predicated region
      $region9: #{tpu_custom_call.1} parent=5 // pred_check
        _
      $region10: #{tpu_custom_call.1} parent=5 // pred_check_branch
        %297 = sbr.rel (%p294) target = $region12
      $region11: #{tpu_custom_call.1} parent=5 // pred_region
        %s298 = ssub.s32 %s22, 1
        // Predicated region
        $region13: #{tpu_custom_call.1} parent=11 // pred_check
          %p299 = pneg %p69
        $region14: #{tpu_custom_call.1} parent=11 // pred_check_branch
          %301 = sbr.rel (%p299) target = $region16
        $region15: #{tpu_custom_call.1} parent=11 // pred_region
          _
        $region16: #{tpu_custom_call.1} parent=11 // pred_fallthru
          _
        // Predicated region
        $region17: #{tpu_custom_call.1} parent=11 // pred_check
          %p302 = pneg %p90
        $region18: #{tpu_custom_call.1} parent=11 // pred_check_branch
          %304 = sbr.rel (%p302) target = $region20
        $region19: #{tpu_custom_call.1} parent=11 // pred_region
          _
        $region20: #{tpu_custom_call.1} parent=11 // pred_fallthru
          _
        // Predicated region
        $region21: #{tpu_custom_call.1} parent=11 // pred_check
          %p305 = pneg %p111
        $region22: #{tpu_custom_call.1} parent=11 // pred_check_branch
          %307 = sbr.rel (%p305) target = $region24
        $region23: #{tpu_custom_call.1} parent=11 // pred_region
          _
        $region24: #{tpu_custom_call.1} parent=11 // pred_fallthru
          _
        // Predicated region
        $region25: #{tpu_custom_call.1} parent=11 // pred_check
          %p308 = pneg %p132
        $region26: #{tpu_custom_call.1} parent=11 // pred_check_branch
          %310 = sbr.rel (%p308) target = $region28
        $region27: #{tpu_custom_call.1} parent=11 // pred_region
          _
        $region28: #{tpu_custom_call.1} parent=11 // pred_fallthru
          _
        // Predicated region
        $region29: #{tpu_custom_call.1} parent=11 // pred_check
          %p311 = pneg %p153
        $region30: #{tpu_custom_call.1} parent=11 // pred_check_branch
          %313 = sbr.rel (%p311) target = $region32
        $region31: #{tpu_custom_call.1} parent=11 // pred_region
          _
        $region32: #{tpu_custom_call.1} parent=11 // pred_fallthru
          _
        // Predicated region
        $region33: #{tpu_custom_call.1} parent=11 // pred_check
          %p314 = pneg %p174
        $region34: #{tpu_custom_call.1} parent=11 // pred_check_branch
          %316 = sbr.rel (%p314) target = $region36
        $region35: #{tpu_custom_call.1} parent=11 // pred_region
          _
        $region36: #{tpu_custom_call.1} parent=11 // pred_fallthru
          _
        // Predicated region
        $region37: #{tpu_custom_call.1} parent=11 // pred_check
          %p317 = pneg %p195
        $region38: #{tpu_custom_call.1} parent=11 // pred_check_branch
          %319 = sbr.rel (%p317) target = $region40
        $region39: #{tpu_custom_call.1} parent=11 // pred_region
          _
        $region40: #{tpu_custom_call.1} parent=11 // pred_fallthru
          _
        // Predicated region
        $region41: #{tpu_custom_call.1} parent=11 // pred_check
          %p320 = pneg %p216
        $region42: #{tpu_custom_call.1} parent=11 // pred_check_branch
          %322 = sbr.rel (%p320) target = $region44
        $region43: #{tpu_custom_call.1} parent=11 // pred_region
          _
        $region44: #{tpu_custom_call.1} parent=11 // pred_fallthru
          _
        // Predicated region
        $region45: #{tpu_custom_call.1} parent=11 // pred_check
          %p323 = pneg %p237
        $region46: #{tpu_custom_call.1} parent=11 // pred_check_branch
          %325 = sbr.rel (%p323) target = $region48
        $region47: #{tpu_custom_call.1} parent=11 // pred_region
          _
        $region48: #{tpu_custom_call.1} parent=11 // pred_fallthru
          _
        // Predicated region
        $region49: #{tpu_custom_call.1} parent=11 // pred_check
          %p326 = pneg %p258
        $region50: #{tpu_custom_call.1} parent=11 // pred_check_branch
          %328 = sbr.rel (%p326) target = $region52
        $region51: #{tpu_custom_call.1} parent=11 // pred_region
          _
        $region52: #{tpu_custom_call.1} parent=11 // pred_fallthru
          _
      $region12: #{tpu_custom_call.1} parent=5 // pred_fallthru
        _
      %p329 = scmp.lt.s32.totalorder %s22, 2
      // Predicated region
      $region53: #{tpu_custom_call.1} parent=5 // pred_check
        %p330 = pneg %p329
      $region54: #{tpu_custom_call.1} parent=5 // pred_check_branch
        %332 = sbr.rel (%p330) target = $region56
      $region55: #{tpu_custom_call.1} parent=5 // pred_region
        // Predicated region
        $region57: #{tpu_custom_call.1} parent=55 // pred_check
          %p333 = pneg %p42
        $region58: #{tpu_custom_call.1} parent=55 // pred_check_branch
          %335 = sbr.rel (%p333) target = $region60
        $region59: #{tpu_custom_call.1} parent=55 // pred_region
          %p336 = scmp.lt.s32.totalorder %s22, 1
          %s337 = scalar_select %p336, %s22, 1
          %s338 = smul.addr %s337, 8
          %s339 = scalar_lea.vmem %s0, %s338
        $region60: #{tpu_custom_call.1} parent=55 // pred_fallthru
          _
      $region56: #{tpu_custom_call.1} parent=5 // pred_fallthru
        _
      %p340 = scmp.le.s32.totalorder 1, %s22
      %p341 = scmp.lt.s32.totalorder %s22, 3
      %p342 = pnand %p340, %p341
      %p343 = pneg %p342
      // Predicated region
      $region61: #{tpu_custom_call.1} parent=5 // pred_check
        _
      $region62: #{tpu_custom_call.1} parent=5 // pred_check_branch
        %345 = sbr.rel (%p342) target = $region64
      $region63: #{tpu_custom_call.1} parent=5 // pred_region
        %s346 = ssub.s32 %s22, 1
        %p347 = scmp.lt.s32.totalorder %s27, 1
        %s348 = scalar_select %p347, %s27, 1
        %s349 = smul.addr %s348, 8
        %s350 = scalar_lea.vmem %s0, %s349
        %p351 = pneg %p48
        %p352 = pneg %p45
        %p353 = pneg %p69
        %p354 = pneg %p66
        %p355 = pneg %p90
        %p356 = pneg %p87
        %p357 = pneg %p111
        %p358 = pneg %p108
        %p359 = pneg %p132
        %p360 = pneg %p129
        %p361 = pneg %p153
        %p362 = pneg %p150
        %p363 = pneg %p174
        %p364 = pneg %p171
        %p365 = pneg %p195
        %p366 = pneg %p192
        %p367 = pneg %p216
        %p368 = pneg %p213
        %p369 = pneg %p237
        %p370 = pneg %p234
        %p371 = pneg %p258
        %p372 = pneg %p255
        %p373 = pneg %p284
        %p374 = pneg %p281
        %s375 = sand.u32 %s271, 1
        %s376 = scalar_lea.sflag [#allocation4], %s375
        %s377 = sand.u32 %s271, 1
        %s378 = scalar_lea.vmem [#allocation3], %s377
        %p379 = scmp.lt.s32.totalorder %s27, 1
        %s380 = scalar_select %p379, %s27, 1
        %s381 = smul.addr %s380, 8
        %s382 = scalar_lea.vmem %s0, %s381
        %v383 = vld [vmem:[%s382] sm:$0xff]
        %v384 = vld [vmem:[%s1] sm:$0xff]
        %v385 = vld [vmem:[%s1 + $0x8] sm:$0xff]
        %v386 = vld [vmem:[%s1 + $0x10] sm:$0xff]
        %v387 = vld [vmem:[%s1 + $0x18] sm:$0xff]
        %v388 = vld [vmem:[%s1 + $0x20] sm:$0xff]
        %v389 = vld [vmem:[%s1 + $0x28] sm:$0xff]
        %v390 = vld [vmem:[%s1 + $0x30] sm:$0xff]
        %v391 = vld [vmem:[%s1 + $0x38] sm:$0xff]
        %v392 = vld [vmem:[%s1 + $0x40] sm:$0xff]
        %v393 = vld [vmem:[%s1 + $0x48] sm:$0xff]
        %v394 = vld [vmem:[%s1 + $0x50] sm:$0xff]
        %v395 = vld [vmem:[%s1 + $0x58] sm:$0xff]
        %v396 = vld [vmem:[%s1 + $0x60] sm:$0xff]
        %v397 = vld [vmem:[%s1 + $0x68] sm:$0xff]
        %v398 = vld [vmem:[%s1 + $0x70] sm:$0xff]
        %v399 = vld [vmem:[%s1 + $0x78] sm:$0xff]
        %v400 = vld [vmem:[%s2] sm:$0x1]
        %v402 = vlaneseq
        %v403 = vshrl.u32 %v402, 7
        %v404 = vsub.s32 0, %v403
        %v405 = vrot.slane %v400, %v404
        %407 = vmatprep.subr.mxu0 0.0
        %408 = vmatpush1.msra.mxu0 %v384
        %409 = vmatprep.subr.mxu0 0.0
        %410 = vmatpush1.msra.mxu0 %v385
        %411 = vmatprep.subr.mxu0 0.0
        %412 = vmatpush1.msra.mxu0 %v386
        %413 = vmatprep.subr.mxu0 0.0
        %414 = vmatpush1.msra.mxu0 %v387
        %415 = vmatprep.subr.mxu0 0.0
        %416 = vmatpush1.msra.mxu0 %v388
        %417 = vmatprep.subr.mxu0 0.0
        %418 = vmatpush1.msra.mxu0 %v389
        %419 = vmatprep.subr.mxu0 0.0
        %420 = vmatpush1.msra.mxu0 %v390
        %421 = vmatprep.subr.mxu0 0.0
        %422 = vmatpush1.msra.mxu0 %v391
        %423 = vmatprep.subr.mxu0 0.0
        %424 = vmatpush1.msra.mxu0 %v392
        %425 = vmatprep.subr.mxu0 0.0
        %426 = vmatpush1.msra.mxu0 %v393
        %427 = vmatprep.subr.mxu0 0.0
        %428 = vmatpush1.msra.mxu0 %v394
        %429 = vmatprep.subr.mxu0 0.0
        %430 = vmatpush1.msra.mxu0 %v395
        %431 = vmatprep.subr.mxu0 0.0
        %432 = vmatpush1.msra.mxu0 %v396
        %433 = vmatprep.subr.mxu0 0.0
        %434 = vmatpush1.msra.mxu0 %v397
        %435 = vmatprep.subr.mxu0 0.0
        %436 = vmatpush1.msra.mxu0 %v398
        %437 = vmatprep.subr.mxu0 0.0
        %438 = vmatpush1.msra.mxu0 %v399
        %439 = vmatprep.subr.mxu0 0.0
        %440 = vmatpush1.msra.mxu0 0.0
        %441 = vmatprep.subr.mxu0 0.0
        %442 = vmatpush1.msra.mxu0 0.0
        %443 = vmatprep.subr.mxu0 0.0
        %444 = vmatpush1.msra.mxu0 0.0
        %445 = vmatprep.subr.mxu0 0.0
        %446 = vmatpush1.msra.mxu0 0.0
        %447 = vmatprep.subr.mxu0 0.0
        %448 = vmatpush1.msra.mxu0 0.0
        %449 = vmatprep.subr.mxu0 0.0
        %450 = vmatpush1.msra.mxu0 0.0
        %451 = vmatprep.subr.mxu0 0.0
        %452 = vmatpush1.msra.mxu0 0.0
        %453 = vmatprep.subr.mxu0 0.0
        %454 = vmatpush1.msra.mxu0 0.0
        %455 = vmatprep.subr.mxu0 0.0
        %456 = vmatpush1.msra.mxu0 0.0
        %457 = vmatprep.subr.mxu0 0.0
        %458 = vmatpush1.msra.mxu0 0.0
        %459 = vmatprep.subr.mxu0 0.0
        %460 = vmatpush1.msra.mxu0 0.0
        %461 = vmatprep.subr.mxu0 0.0
        %462 = vmatpush1.msra.mxu0 0.0
        %463 = vmatprep.subr.mxu0 0.0
        %464 = vmatpush1.msra.mxu0 0.0
        %465 = vmatprep.subr.mxu0 0.0
        %466 = vmatpush1.msra.mxu0 0.0
        %467 = vmatprep.subr.mxu0 0.0
        %468 = vmatpush1.msra.mxu0 0.0
        %469 = vmatprep.subr.mxu0 0.0
        %470 = vmatpush1.msra.mxu0 0.0
        %471 = vmatprep.mubr.f32.mxu0 0.0
        %472 = vmatmul.mubr.f32.gmra.mrb[0].mxu0 %v383
        %v473 = vpop.f32.mrb[0].mxu0
        %v474 = vadd.f32 %v405, %v473
        %v475 = vpop.f32.mrb[0].mxu0
        %476 = vdwg.mxu0
        %v477 = vmax.f32 %v474, 0.0
        %v478 = vld [vmem:[%s3] sm:$0xff]
        %v479 = vld [vmem:[%s3 + $0x8] sm:$0xff]
        %v480 = vld [vmem:[%s3 + $0x10] sm:$0xff]
        %v481 = vld [vmem:[%s3 + $0x18] sm:$0xff]
        %v482 = vld [vmem:[%s3 + $0x20] sm:$0xff]
        %v483 = vld [vmem:[%s3 + $0x28] sm:$0xff]
        %v484 = vld [vmem:[%s3 + $0x30] sm:$0xff]
        %v485 = vld [vmem:[%s3 + $0x38] sm:$0xff]
        %v486 = vld [vmem:[%s3 + $0x40] sm:$0xff]
        %v487 = vld [vmem:[%s3 + $0x48] sm:$0xff]
        %v488 = vld [vmem:[%s3 + $0x50] sm:$0xff]
        %v489 = vld [vmem:[%s3 + $0x58] sm:$0xff]
        %v490 = vld [vmem:[%s3 + $0x60] sm:$0xff]
        %v491 = vld [vmem:[%s3 + $0x68] sm:$0xff]
        %v492 = vld [vmem:[%s3 + $0x70] sm:$0xff]
        %v493 = vld [vmem:[%s3 + $0x78] sm:$0xff]
        %v494 = vld [vmem:[%s4] sm:$0x1]
        %v496 = vlaneseq
        %v497 = vshrl.u32 %v496, 7
        %v498 = vsub.s32 0, %v497
        %v499 = vrot.slane %v494, %v498
        %501 = vmatprep.subr.mxu0 0.0
        %502 = vmatpush1.msra.mxu0 %v478
        %503 = vmatprep.subr.mxu0 0.0
        %504 = vmatpush1.msra.mxu0 %v479
        %505 = vmatprep.subr.mxu0 0.0
        %506 = vmatpush1.msra.mxu0 %v480
        %507 = vmatprep.subr.mxu0 0.0
        %508 = vmatpush1.msra.mxu0 %v481
        %509 = vmatprep.subr.mxu0 0.0
        %510 = vmatpush1.msra.mxu0 %v482
        %511 = vmatprep.subr.mxu0 0.0
        %512 = vmatpush1.msra.mxu0 %v483
        %513 = vmatprep.subr.mxu0 0.0
        %514 = vmatpush1.msra.mxu0 %v484
        %515 = vmatprep.subr.mxu0 0.0
        %516 = vmatpush1.msra.mxu0 %v485
        %517 = vmatprep.subr.mxu0 0.0
        %518 = vmatpush1.msra.mxu0 %v486
        %519 = vmatprep.subr.mxu0 0.0
        %520 = vmatpush1.msra.mxu0 %v487
        %521 = vmatprep.subr.mxu0 0.0
        %522 = vmatpush1.msra.mxu0 %v488
        %523 = vmatprep.subr.mxu0 0.0
        %524 = vmatpush1.msra.mxu0 %v489
        %525 = vmatprep.subr.mxu0 0.0
        %526 = vmatpush1.msra.mxu0 %v490
        %527 = vmatprep.subr.mxu0 0.0
        %528 = vmatpush1.msra.mxu0 %v491
        %529 = vmatprep.subr.mxu0 0.0
        %530 = vmatpush1.msra.mxu0 %v492
        %531 = vmatprep.subr.mxu0 0.0
        %532 = vmatpush1.msra.mxu0 %v493
        %533 = vmatprep.subr.mxu0 0.0
        %534 = vmatpush1.msra.mxu0 0.0
        %535 = vmatprep.subr.mxu0 0.0
        %536 = vmatpush1.msra.mxu0 0.0
        %537 = vmatprep.subr.mxu0 0.0
        %538 = vmatpush1.msra.mxu0 0.0
        %539 = vmatprep.subr.mxu0 0.0
        %540 = vmatpush1.msra.mxu0 0.0
        %541 = vmatprep.subr.mxu0 0.0
        %542 = vmatpush1.msra.mxu0 0.0
        %543 = vmatprep.subr.mxu0 0.0
        %544 = vmatpush1.msra.mxu0 0.0
        %545 = vmatprep.subr.mxu0 0.0
        %546 = vmatpush1.msra.mxu0 0.0
        %547 = vmatprep.subr.mxu0 0.0
        %548 = vmatpush1.msra.mxu0 0.0
        %549 = vmatprep.subr.mxu0 0.0
        %550 = vmatpush1.msra.mxu0 0.0
        %551 = vmatprep.subr.mxu0 0.0
        %552 = vmatpush1.msra.mxu0 0.0
        %553 = vmatprep.subr.mxu0 0.0
        %554 = vmatpush1.msra.mxu0 0.0
        %555 = vmatprep.subr.mxu0 0.0
        %556 = vmatpush1.msra.mxu0 0.0
        %557 = vmatprep.subr.mxu0 0.0
        %558 = vmatpush1.msra.mxu0 0.0
        %559 = vmatprep.subr.mxu0 0.0
        %560 = vmatpush1.msra.mxu0 0.0
        %561 = vmatprep.subr.mxu0 0.0
        %562 = vmatpush1.msra.mxu0 0.0
        %563 = vmatprep.subr.mxu0 0.0
        %564 = vmatpush1.msra.mxu0 0.0
        %565 = vmatprep.mubr.f32.mxu0 0.0
        %566 = vmatmul.mubr.f32.gmra.mrb[0].mxu0 %v477
        %v567 = vpop.f32.mrb[0].mxu0
        %v568 = vadd.f32 %v499, %v567
        %v569 = vpop.f32.mrb[0].mxu0
        %570 = vdwg.mxu0
        %v571 = vmax.f32 %v568, 0.0
        %v572 = vld [vmem:[%s5] sm:$0xff]
        %v573 = vld [vmem:[%s5 + $0x8] sm:$0xff]
        %v574 = vld [vmem:[%s5 + $0x10] sm:$0xff]
        %v575 = vld [vmem:[%s5 + $0x18] sm:$0xff]
        %v576 = vld [vmem:[%s5 + $0x20] sm:$0xff]
        %v577 = vld [vmem:[%s5 + $0x28] sm:$0xff]
        %v578 = vld [vmem:[%s5 + $0x30] sm:$0xff]
        %v579 = vld [vmem:[%s5 + $0x38] sm:$0xff]
        %v580 = vld [vmem:[%s5 + $0x40] sm:$0xff]
        %v581 = vld [vmem:[%s5 + $0x48] sm:$0xff]
        %v582 = vld [vmem:[%s5 + $0x50] sm:$0xff]
        %v583 = vld [vmem:[%s5 + $0x58] sm:$0xff]
        %v584 = vld [vmem:[%s5 + $0x60] sm:$0xff]
        %v585 = vld [vmem:[%s5 + $0x68] sm:$0xff]
        %v586 = vld [vmem:[%s5 + $0x70] sm:$0xff]
        %v587 = vld [vmem:[%s5 + $0x78] sm:$0xff]
        %v588 = vld [vmem:[%s6] sm:$0x1]
        %v590 = vlaneseq
        %v591 = vshrl.u32 %v590, 7
        %v592 = vsub.s32 0, %v591
        %v593 = vrot.slane %v588, %v592
        %595 = vmatprep.subr.mxu0 0.0
        %596 = vmatpush1.msra.mxu0 %v572
        %597 = vmatprep.subr.mxu0 0.0
        %598 = vmatpush1.msra.mxu0 %v573
        %599 = vmatprep.subr.mxu0 0.0
        %600 = vmatpush1.msra.mxu0 %v574
        %601 = vmatprep.subr.mxu0 0.0
        %602 = vmatpush1.msra.mxu0 %v575
        %603 = vmatprep.subr.mxu0 0.0
        %604 = vmatpush1.msra.mxu0 %v576
        %605 = vmatprep.subr.mxu0 0.0
        %606 = vmatpush1.msra.mxu0 %v577
        %607 = vmatprep.subr.mxu0 0.0
        %608 = vmatpush1.msra.mxu0 %v578
        %609 = vmatprep.subr.mxu0 0.0
        %610 = vmatpush1.msra.mxu0 %v579
        %611 = vmatprep.subr.mxu0 0.0
        %612 = vmatpush1.msra.mxu0 %v580
        %613 = vmatprep.subr.mxu0 0.0
        %614 = vmatpush1.msra.mxu0 %v581
        %615 = vmatprep.subr.mxu0 0.0
        %616 = vmatpush1.msra.mxu0 %v582
        %617 = vmatprep.subr.mxu0 0.0
        %618 = vmatpush1.msra.mxu0 %v583
        %619 = vmatprep.subr.mxu0 0.0
        %620 = vmatpush1.msra.mxu0 %v584
        %621 = vmatprep.subr.mxu0 0.0
        %622 = vmatpush1.msra.mxu0 %v585
        %623 = vmatprep.subr.mxu0 0.0
        %624 = vmatpush1.msra.mxu0 %v586
        %625 = vmatprep.subr.mxu0 0.0
        %626 = vmatpush1.msra.mxu0 %v587
        %627 = vmatprep.subr.mxu0 0.0
        %628 = vmatpush1.msra.mxu0 0.0
        %629 = vmatprep.subr.mxu0 0.0
        %630 = vmatpush1.msra.mxu0 0.0
        %631 = vmatprep.subr.mxu0 0.0
        %632 = vmatpush1.msra.mxu0 0.0
        %633 = vmatprep.subr.mxu0 0.0
        %634 = vmatpush1.msra.mxu0 0.0
        %635 = vmatprep.subr.mxu0 0.0
        %636 = vmatpush1.msra.mxu0 0.0
        %637 = vmatprep.subr.mxu0 0.0
        %638 = vmatpush1.msra.mxu0 0.0
        %639 = vmatprep.subr.mxu0 0.0
        %640 = vmatpush1.msra.mxu0 0.0
        %641 = vmatprep.subr.mxu0 0.0
        %642 = vmatpush1.msra.mxu0 0.0
        %643 = vmatprep.subr.mxu0 0.0
        %644 = vmatpush1.msra.mxu0 0.0
        %645 = vmatprep.subr.mxu0 0.0
        %646 = vmatpush1.msra.mxu0 0.0
        %647 = vmatprep.subr.mxu0 0.0
        %648 = vmatpush1.msra.mxu0 0.0
        %649 = vmatprep.subr.mxu0 0.0
        %650 = vmatpush1.msra.mxu0 0.0
        %651 = vmatprep.subr.mxu0 0.0
        %652 = vmatpush1.msra.mxu0 0.0
        %653 = vmatprep.subr.mxu0 0.0
        %654 = vmatpush1.msra.mxu0 0.0
        %655 = vmatprep.subr.mxu0 0.0
        %656 = vmatpush1.msra.mxu0 0.0
        %657 = vmatprep.subr.mxu0 0.0
        %658 = vmatpush1.msra.mxu0 0.0
        %659 = vmatprep.mubr.f32.mxu0 0.0
        %660 = vmatmul.mubr.f32.gmra.mrb[0].mxu0 %v571
        %v661 = vpop.f32.mrb[0].mxu0
        %v662 = vadd.f32 %v593, %v661
        %v663 = vpop.f32.mrb[0].mxu0
        %664 = vdwg.mxu0
        %v665 = vmax.f32 %v662, 0.0
        %v666 = vld [vmem:[%s7] sm:$0xff]
        %v667 = vld [vmem:[%s7 + $0x8] sm:$0xff]
        %v668 = vld [vmem:[%s7 + $0x10] sm:$0xff]
        %v669 = vld [vmem:[%s7 + $0x18] sm:$0xff]
        %v670 = vld [vmem:[%s7 + $0x20] sm:$0xff]
        %v671 = vld [vmem:[%s7 + $0x28] sm:$0xff]
        %v672 = vld [vmem:[%s7 + $0x30] sm:$0xff]
        %v673 = vld [vmem:[%s7 + $0x38] sm:$0xff]
        %v674 = vld [vmem:[%s8] sm:$0x1]
        %v676 = vlaneseq
        %v677 = vshrl.u32 %v676, 7
        %v678 = vsub.s32 0, %v677
        %v679 = vrot.slane %v674, %v678
        %vm681 = vcmask 523264
        %v683 = vsel %vm681, %v665, 0
        %685 = vmatprep.subr.mxu0 0.0
        %686 = vmatpush1.msra.mxu0 %v666
        %687 = vmatprep.subr.mxu0 0.0
        %688 = vmatpush1.msra.mxu0 %v667
        %689 = vmatprep.subr.mxu0 0.0
        %690 = vmatpush1.msra.mxu0 %v668
        %691 = vmatprep.subr.mxu0 0.0
        %692 = vmatpush1.msra.mxu0 %v669
        %693 = vmatprep.subr.mxu0 0.0
        %694 = vmatpush1.msra.mxu0 %v670
        %695 = vmatprep.subr.mxu0 0.0
        %696 = vmatpush1.msra.mxu0 %v671
        %697 = vmatprep.subr.mxu0 0.0
        %698 = vmatpush1.msra.mxu0 %v672
        %699 = vmatprep.subr.mxu0 0.0
        %700 = vmatpush1.msra.mxu0 %v673
        %701 = vmatprep.subr.mxu0 0.0
        %702 = vmatpush1.msra.mxu0 0.0
        %703 = vmatprep.subr.mxu0 0.0
        %704 = vmatpush1.msra.mxu0 0.0
        %705 = vmatprep.subr.mxu0 0.0
        %706 = vmatpush1.msra.mxu0 0.0
        %707 = vmatprep.subr.mxu0 0.0
        %708 = vmatpush1.msra.mxu0 0.0
        %709 = vmatprep.subr.mxu0 0.0
        %710 = vmatpush1.msra.mxu0 0.0
        %711 = vmatprep.subr.mxu0 0.0
        %712 = vmatpush1.msra.mxu0 0.0
        %713 = vmatprep.subr.mxu0 0.0
        %714 = vmatpush1.msra.mxu0 0.0
        %715 = vmatprep.subr.mxu0 0.0
        %716 = vmatpush1.msra.mxu0 0.0
        %717 = vmatprep.subr.mxu0 0.0
        %718 = vmatpush1.msra.mxu0 0.0
        %719 = vmatprep.subr.mxu0 0.0
        %720 = vmatpush1.msra.mxu0 0.0
        %721 = vmatprep.subr.mxu0 0.0
        %722 = vmatpush1.msra.mxu0 0.0
        %723 = vmatprep.subr.mxu0 0.0
        %724 = vmatpush1.msra.mxu0 0.0
        %725 = vmatprep.subr.mxu0 0.0
        %726 = vmatpush1.msra.mxu0 0.0
        %727 = vmatprep.subr.mxu0 0.0
        %728 = vmatpush1.msra.mxu0 0.0
        %729 = vmatprep.subr.mxu0 0.0
        %730 = vmatpush1.msra.mxu0 0.0
        %731 = vmatprep.subr.mxu0 0.0
        %732 = vmatpush1.msra.mxu0 0.0
        %733 = vmatprep.subr.mxu0 0.0
        %734 = vmatpush1.msra.mxu0 0.0
        %735 = vmatprep.subr.mxu0 0.0
        %736 = vmatpush1.msra.mxu0 0.0
        %737 = vmatprep.subr.mxu0 0.0
        %738 = vmatpush1.msra.mxu0 0.0
        %739 = vmatprep.subr.mxu0 0.0
        %740 = vmatpush1.msra.mxu0 0.0
        %741 = vmatprep.subr.mxu0 0.0
        %742 = vmatpush1.msra.mxu0 0.0
        %743 = vmatprep.subr.mxu0 0.0
        %744 = vmatpush1.msra.mxu0 0.0
        %745 = vmatprep.subr.mxu0 0.0
        %746 = vmatpush1.msra.mxu0 0.0
        %747 = vmatprep.subr.mxu0 0.0
        %748 = vmatpush1.msra.mxu0 0.0
        %749 = vmatprep.mubr.f32.mxu0 0.0
        %750 = vmatmul.mubr.f32.gmra.mrb[0].mxu0 %v683
        %v751 = vpop.f32.mrb[0].mxu0
        %v752 = vadd.f32 %v679, %v751
        %v753 = vpop.f32.mrb[0].mxu0
        %754 = vdwg.mxu0
        %v755 = vmax.f32 %v752, 0.0
        %v756 = vld [vmem:[%s9] sm:$0x1]
        %v757 = vld [vmem:[#allocation2] sm:$0x1]
        %759 = vset.pattern.permute.xlu0 0
        %760 = vperm.xlu0 %759, %v757
        %v761 = vpop.permute.xlu0 %760
        %v763 = vlaneseq
        %v764 = vshrl.u32 %v763, 7
        %v765 = vsub.s32 0, %v764
        %v766 = vrot.slane %v761, %v765
        %vm767 = vcmask 261120
        %v769 = vsel %vm767, %v756, 0
        %v772 = vsel %vm767, %v755, 0
        %774 = vmatprep.subr.mxu0 0.0
        %775 = vmatpush1.xpose.msra.mxu0 %v772
        %776 = vmatprep.subr.mxu0 0.0
        %777 = vmatpush1.xpose.msra.mxu0 0.0
        %778 = vmatprep.subr.mxu0 0.0
        %779 = vmatpush1.xpose.msra.mxu0 0.0
        %780 = vmatprep.subr.mxu0 0.0
        %781 = vmatpush1.xpose.msra.mxu0 0.0
        %782 = vmatprep.subr.mxu0 0.0
        %783 = vmatpush1.xpose.msra.mxu0 0.0
        %784 = vmatprep.subr.mxu0 0.0
        %785 = vmatpush1.xpose.msra.mxu0 0.0
        %786 = vmatprep.subr.mxu0 0.0
        %787 = vmatpush1.xpose.msra.mxu0 0.0
        %788 = vmatprep.subr.mxu0 0.0
        %789 = vmatpush1.xpose.msra.mxu0 0.0
        %790 = vmatprep.subr.mxu0 0.0
        %791 = vmatpush1.xpose.msra.mxu0 0.0
        %792 = vmatprep.subr.mxu0 0.0
        %793 = vmatpush1.xpose.msra.mxu0 0.0
        %794 = vmatprep.subr.mxu0 0.0
        %795 = vmatpush1.xpose.msra.mxu0 0.0
        %796 = vmatprep.subr.mxu0 0.0
        %797 = vmatpush1.xpose.msra.mxu0 0.0
        %798 = vmatprep.subr.mxu0 0.0
        %799 = vmatpush1.xpose.msra.mxu0 0.0
        %800 = vmatprep.subr.mxu0 0.0
        %801 = vmatpush1.xpose.msra.mxu0 0.0
        %802 = vmatprep.subr.mxu0 0.0
        %803 = vmatpush1.xpose.msra.mxu0 0.0
        %804 = vmatprep.subr.mxu0 0.0
        %805 = vmatpush1.xpose.msra.mxu0 0.0
        %806 = vmatprep.subr.mxu0 0.0
        %807 = vmatpush1.xpose.msra.mxu0 0.0
        %808 = vmatprep.subr.mxu0 0.0
        %809 = vmatpush1.xpose.msra.mxu0 0.0
        %810 = vmatprep.subr.mxu0 0.0
        %811 = vmatpush1.xpose.msra.mxu0 0.0
        %812 = vmatprep.subr.mxu0 0.0
        %813 = vmatpush1.xpose.msra.mxu0 0.0
        %814 = vmatprep.subr.mxu0 0.0
        %815 = vmatpush1.xpose.msra.mxu0 0.0
        %816 = vmatprep.subr.mxu0 0.0
        %817 = vmatpush1.xpose.msra.mxu0 0.0
        %818 = vmatprep.subr.mxu0 0.0
        %819 = vmatpush1.xpose.msra.mxu0 0.0
        %820 = vmatprep.subr.mxu0 0.0
        %821 = vmatpush1.xpose.msra.mxu0 0.0
        %822 = vmatprep.subr.mxu0 0.0
        %823 = vmatpush1.xpose.msra.mxu0 0.0
        %824 = vmatprep.subr.mxu0 0.0
        %825 = vmatpush1.xpose.msra.mxu0 0.0
        %826 = vmatprep.subr.mxu0 0.0
        %827 = vmatpush1.xpose.msra.mxu0 0.0
        %828 = vmatprep.subr.mxu0 0.0
        %829 = vmatpush1.xpose.msra.mxu0 0.0
        %830 = vmatprep.subr.mxu0 0.0
        %831 = vmatpush1.xpose.msra.mxu0 0.0
        %832 = vmatprep.subr.mxu0 0.0
        %833 = vmatpush1.xpose.msra.mxu0 0.0
        %834 = vmatprep.subr.mxu0 0.0
        %835 = vmatpush1.xpose.msra.mxu0 0.0
        %836 = vmatprep.subr.mxu0 0.0
        %837 = vmatpush1.xpose.msra.mxu0 0.0
        %838 = vmatprep.mubr.f32.mxu0 0.0
        %839 = vmatmul.mubr.f32.gmra.mrb[0].mxu0 %v769
        %v840 = vpop.f32.mrb[0].mxu0
        %v841 = vadd.f32 %v766, %v840
        %v842 = vpop.f32.mrb[0].mxu0
        %843 = vdwg.mxu0
        %vm844 = vcmask 57344
        %845 = vst.msk [vmem:[%s378] sm:$0x1] %vm844, %v841
        %s846 = sand.u32 %s271, 1
        %s847 = scalar_lea.sflag [#allocation4], %s846
        %s848 = sand.u32 %s271, 1
        %s849 = scalar_lea.vmem [#allocation3], %s848
        // Predicated region
        $region65: #{tpu_custom_call.1} parent=63 // pred_check
          %p850 = pneg %p281
        $region66: #{tpu_custom_call.1} parent=63 // pred_check_branch
          %852 = sbr.rel (%p850) target = $region68
        $region67: #{tpu_custom_call.1} parent=63 // pred_region
          %s854 = ssub.s32 16, 16
          %855 = vsyncadd %s847, %s854
          %s856 = smul.addr %s27, 16
          %s857 = scalar_lea.hbm %s11, %s856
          %s859 = sshll.u32 %s849, 4
          %s860 = int_to_ptr.vmem [resolvable:$true] %s859
          %862 = dma.vmem_to_hbm [thread:$0]  %s860, 16, %s857, %s847
        $region68: #{tpu_custom_call.1} parent=63 // pred_fallthru
          _
      $region64: #{tpu_custom_call.1} parent=5 // pred_fallthru
        _
      %p863 = scmp.le.s32.totalorder 2, %s22
      // Predicated region
      $region69: #{tpu_custom_call.1} parent=5 // pred_check
        %p864 = pneg %p863
      $region70: #{tpu_custom_call.1} parent=5 // pred_check_branch
        %866 = sbr.rel (%p864) target = $region72
      $region71: #{tpu_custom_call.1} parent=5 // pred_region
        %s867 = ssub.s32 %s22, 2
        // Predicated region
        $region73: #{tpu_custom_call.1} parent=71 // pred_check
          %p868 = pneg %p287
        $region74: #{tpu_custom_call.1} parent=71 // pred_check_branch
          %870 = sbr.rel (%p868) target = $region76
        $region75: #{tpu_custom_call.1} parent=71 // pred_region
          %s871 = sand.u32 %s272, 1
          %s872 = scalar_lea.sflag [#allocation4], %s871
          %s873 = sand.u32 %s272, 1
          %s874 = scalar_lea.vmem [#allocation3], %s873
          %875 = dma.done %s872, 16
        $region76: #{tpu_custom_call.1} parent=71 // pred_fallthru
          _
      $region72: #{tpu_custom_call.1} parent=5 // pred_fallthru
        _
    $region6: #{tpu_custom_call.1} parent=1 // loop_footer
      %s26 = sadd.s32 1, %s22
    $region7: #{tpu_custom_call.1} parent=1 // loop_footer_branch
      %21 = sbr.rel target = $region3
    $region8: #{tpu_custom_call.1} parent=1 // loop_exit
      _
    %876 = vsyncpa [#allocation4], 1
    %s877 = scalar_lea.sflag [#allocation4], 1
    %878 = vsyncpa %s877, 1

</llo_original>
